<compile_context>
chip_gen: v6e
topology: v6e:2x2x1
jax: 0.10.0
libtpu: 0.0.40
codegen_flags: <defaults>
</compile_context>

<pallas_src>
import functools
import math

import jax
import jax.numpy as jnp
from jax.experimental import pallas as pl
from jax.experimental.pallas import tpu as pltpu

# HF BertConfig uses layer_norm_eps=1e-12 (nn.LayerNorm default is 1e-5).
LN_EPS = 1e-12

# Tile caps.  With K kept whole, the worst working set is the FFN-down
# residual+LN kernel (K = 3072): at tm=512 it is ~18 MiB double-buffered,
# comfortably under the scoped-VMEM limit below on v5e/v6e/v7x.
TM_CAP = 1024          # row (sublane) tile for plain linears
TM_LN_CAP = 512        # row tile for the fused residual+LN linears (K=3072)
TN_CAP = 1024          # output-column (lane) tile
TQ_CAP = 256           # query tile for attention
VMEM_LIMIT = 48 * 1024 * 1024


def _round_up(x, m):
    return ((x + m - 1) // m) * m


def _tile_sub(dim, cap):
    """Sublane-axis tile: full dim if it fits, else the largest divisor <= cap
    that is a multiple of 128 (preferred) or 8; falls back to the full dim."""
    if dim <= cap:
        return dim
    for align in (128, 8):
        t = (cap // align) * align
        while t >= align:
            if dim % t == 0:
                return t
            t -= align
    return dim


def _tile_lane(dim, cap):
    """Lane-axis tile: full dim if it fits, else the largest 128-multiple
    divisor <= cap; falls back to the full dim."""
    if dim <= cap:
        return dim
    t = (cap // 128) * 128
    while t >= 128:
        if dim % t == 0:
            return t
        t -= 128
    return dim


def _gelu(y):
    # exact (erf) GELU, matches torch.nn.functional.gelu default
    return 0.5 * y * (1.0 + jax.lax.erf(y * (1.0 / math.sqrt(2.0))))


# ----------------------------------------------------------------------------
# Plain linear: y = act(x @ W + b), full-K, grid=(M/tm, N/tn).
# x block index is (i, 0) -> the activation panel is fetched once per row tile
# and reused across the whole N sweep; weights stream.
# ----------------------------------------------------------------------------
def _linear_kernel(x_ref, w_ref, b_ref, o_ref, *, activation):
    y = jnp.dot(x_ref[...], w_ref[...], preferred_element_type=jnp.float32)
    y = y + b_ref[...].astype(jnp.float32)
    if activation == "gelu":
        y = _gelu(y)
    elif activation == "tanh":
        y = jnp.tanh(y)
    o_ref[...] = y.astype(o_ref.dtype)


def linear(x, w, b, activation="none", out_dtype=jnp.bfloat16):
    """x:(M,K) bf16, w:(K,N) bf16, b:(N,) f32."""
    M, K = x.shape
    N = w.shape[1]
    tm = _tile_sub(M, TM_CAP)
    tn = _tile_lane(N, TN_CAP)
    return pl.pallas_call(
        functools.partial(_linear_kernel, activation=activation),
        grid=(M // tm, N // tn),
        out_shape=jax.ShapeDtypeStruct((M, N), out_dtype),
        in_specs=[
            pl.BlockSpec((tm, K), lambda i, j: (i, 0)),
            pl.BlockSpec((K, tn), lambda i, j: (0, j)),
            pl.BlockSpec((1, tn), lambda i, j: (0, j)),
        ],
        out_specs=pl.BlockSpec((tm, tn), lambda i, j: (i, j)),
        compiler_params=pltpu.CompilerParams(
            dimension_semantics=("parallel", "parallel"),
            vmem_limit_bytes=VMEM_LIMIT),
    )(x.astype(jnp.bfloat16), w, b.reshape(1, N))


# ----------------------------------------------------------------------------
# Fused linear + residual + LayerNorm (N = H kept whole for the LN reduction)
# ----------------------------------------------------------------------------
def _linear_res_ln_kernel(x_ref, w_ref, b_ref, r_ref, g_ref, bb_ref, o_ref,
                          *, eps):
    y = jnp.dot(x_ref[...], w_ref[...], preferred_element_type=jnp.float32)
    y = (y + b_ref[...].astype(jnp.float32) + r_ref[...].astype(jnp.float32))
    mu = jnp.mean(y, axis=-1, keepdims=True)
    var = jnp.mean(jnp.square(y - mu), axis=-1, keepdims=True)
    yn = (y - mu) * jax.lax.rsqrt(var + eps)
    o_ref[...] = (yn * g_ref[...].astype(jnp.float32)
                  + bb_ref[...].astype(jnp.float32)).astype(o_ref.dtype)


def linear_residual_layernorm(x, w, b, residual, gamma, beta,
                              eps=LN_EPS, out_dtype=jnp.bfloat16):
    """LayerNorm((x @ W + b) + residual)."""
    M, K = x.shape
    N = w.shape[1]
    tm = _tile_sub(M, TM_LN_CAP)
    return pl.pallas_call(
        functools.partial(_linear_res_ln_kernel, eps=eps),
        grid=(M // tm,),
        out_shape=jax.ShapeDtypeStruct((M, N), out_dtype),
        in_specs=[
            pl.BlockSpec((tm, K), lambda i: (i, 0)),
            pl.BlockSpec((K, N), lambda i: (0, 0)),
            pl.BlockSpec((1, N), lambda i: (0, 0)),
            pl.BlockSpec((tm, N), lambda i: (i, 0)),
            pl.BlockSpec((1, N), lambda i: (0, 0)),
            pl.BlockSpec((1, N), lambda i: (0, 0)),
        ],
        out_specs=pl.BlockSpec((tm, N), lambda i: (i, 0)),
        compiler_params=pltpu.CompilerParams(
            dimension_semantics=("parallel",),
            vmem_limit_bytes=VMEM_LIMIT),
    )(x.astype(jnp.bfloat16), w, b.reshape(1, N), residual,
      gamma.reshape(1, N), beta.reshape(1, N))


# ----------------------------------------------------------------------------
# Fused linear + GELU + LayerNorm (MLM-head transform: dense -> gelu -> LN)
# ----------------------------------------------------------------------------
def _linear_gelu_ln_kernel(x_ref, w_ref, b_ref, g_ref, bb_ref, o_ref, *, eps):
    y = jnp.dot(x_ref[...], w_ref[...], preferred_element_type=jnp.float32)
    y = _gelu(y + b_ref[...].astype(jnp.float32))
    mu = jnp.mean(y, axis=-1, keepdims=True)
    var = jnp.mean(jnp.square(y - mu), axis=-1, keepdims=True)
    yn = (y - mu) * jax.lax.rsqrt(var + eps)
    o_ref[...] = (yn * g_ref[...].astype(jnp.float32)
                  + bb_ref[...].astype(jnp.float32)).astype(o_ref.dtype)


def linear_gelu_layernorm(x, w, b, gamma, beta, eps=LN_EPS,
                          out_dtype=jnp.bfloat16):
    M, K = x.shape
    N = w.shape[1]
    tm = _tile_sub(M, TM_LN_CAP)
    return pl.pallas_call(
        functools.partial(_linear_gelu_ln_kernel, eps=eps),
        grid=(M // tm,),
        out_shape=jax.ShapeDtypeStruct((M, N), out_dtype),
        in_specs=[
            pl.BlockSpec((tm, K), lambda i: (i, 0)),
            pl.BlockSpec((K, N), lambda i: (0, 0)),
            pl.BlockSpec((1, N), lambda i: (0, 0)),
            pl.BlockSpec((1, N), lambda i: (0, 0)),
            pl.BlockSpec((1, N), lambda i: (0, 0)),
        ],
        out_specs=pl.BlockSpec((tm, N), lambda i: (i, 0)),
        compiler_params=pltpu.CompilerParams(
            dimension_semantics=("parallel",),
            vmem_limit_bytes=VMEM_LIMIT),
    )(x.astype(jnp.bfloat16), w, b.reshape(1, N),
      gamma.reshape(1, N), beta.reshape(1, N))


# ----------------------------------------------------------------------------
# Row-tiled LayerNorm (embeddings)
# ----------------------------------------------------------------------------
def _layernorm_kernel(x_ref, g_ref, b_ref, o_ref, *, eps):
    x = x_ref[...].astype(jnp.float32)
    mu = jnp.mean(x, axis=-1, keepdims=True)
    var = jnp.mean(jnp.square(x - mu), axis=-1, keepdims=True)
    y = (x - mu) * jax.lax.rsqrt(var + eps)
    o_ref[...] = (y * g_ref[...].astype(jnp.float32)
                  + b_ref[...].astype(jnp.float32)).astype(o_ref.dtype)


def layernorm(x, g, b, eps=LN_EPS, out_dtype=jnp.bfloat16):
    M, H = x.shape
    tm = _tile_sub(M, 1024)
    return pl.pallas_call(
        functools.partial(_layernorm_kernel, eps=eps),
        grid=(M // tm,),
        out_shape=jax.ShapeDtypeStruct((M, H), out_dtype),
        in_specs=[
            pl.BlockSpec((tm, H), lambda i: (i, 0)),
            pl.BlockSpec((1, H), lambda i: (0, 0)),
            pl.BlockSpec((1, H), lambda i: (0, 0)),
        ],
        out_specs=pl.BlockSpec((tm, H), lambda i: (i, 0)),
        compiler_params=pltpu.CompilerParams(
            dimension_semantics=("parallel",),
            vmem_limit_bytes=VMEM_LIMIT),
    )(x, g.reshape(1, H), b.reshape(1, H))


# ----------------------------------------------------------------------------
# Multi-head self-attention on packed (S, 3H) QKV, grid=(B, S//tq).
# Q rows are tiled; the full (S, 3H) panel (for K/V) is fetched once per batch
# element and reused across the query sweep.  Heads are sliced from the lane
# axis inside the kernel (no HBM split-heads transposes) and written per-head
# straight into the output block (no concatenate keeping all heads live).
# ----------------------------------------------------------------------------
def _attention_kernel(q_ref, kv_ref, o_ref, *, nh, hd, scale):
    H = nh * hd
    for h in range(nh):                          # static unroll over heads
        q = q_ref[:, h * hd:(h + 1) * hd]                        # (tq, hd)
        k = kv_ref[:, H + h * hd:H + (h + 1) * hd]               # (S, hd)
        v = kv_ref[:, 2 * H + h * hd:2 * H + (h + 1) * hd]       # (S, hd)
        # q . k^T via dot_general contracting on hd (no materialized k.T)
        s = jax.lax.dot_general(q, k, (((1,), (1,)), ((), ())),
                                preferred_element_type=jnp.float32) * scale
        s = s - jnp.max(s, axis=-1, keepdims=True)
        p = jnp.exp(s)
        l = jnp.sum(p, axis=-1, keepdims=True)
        # Deferred normalization: scale the (tq, hd) context, not the (tq, S)
        # probabilities; the reciprocal runs on the EUP slot.
        ctx = jnp.dot(p.astype(v.dtype), v, preferred_element_type=jnp.float32)
        ctx = ctx * pl.reciprocal(l, approx=True)
        o_ref[:, h * hd:(h + 1) * hd] = ctx.astype(o_ref.dtype)


def mha_attention(qkv, nh, out_dtype=jnp.bfloat16):
    """qkv: (B, S, 3H) packed [q|k|v]  ->  context (B, S, H)."""
    # TODO(synk): attention_mask is not applied; for padded batches this
    #             diverges from PyTorch (acknowledged in the module spec path
    #             attention_mask=None).
    B, S, H3 = qkv.shape
    H = H3 // 3
    hd = H // nh
    tq = _tile_sub(S, TQ_CAP)
    return pl.pallas_call(
        functools.partial(_attention_kernel, nh=nh, hd=hd,
                          scale=1.0 / math.sqrt(hd)),
        grid=(B, S // tq),
        out_shape=jax.ShapeDtypeStruct((B, S, H), out_dtype),
        in_specs=[
            pl.BlockSpec((None, tq, H3), lambda b, qi: (b, qi, 0)),  # Q rows
            pl.BlockSpec((None, S, H3), lambda b, qi: (b, 0, 0)),    # K/V (full)
        ],
        out_specs=pl.BlockSpec((None, tq, H), lambda b, qi: (b, qi, 0)),
        compiler_params=pltpu.CompilerParams(
            dimension_semantics=("parallel", "parallel"),
            vmem_limit_bytes=VMEM_LIMIT),
    )(qkv, qkv)


# ----------------------------------------------------------------------------
# Parameter initialization (deterministic, mirrors _init_weights).
# Matmul weights are stored in bf16 once here (no per-call recast traffic);
# the tied decoder weight is pre-transposed to (H, Vp) bf16 with the vocab
# padded to a lane-aligned multiple so the decoder N-tiles are 256+ wide.
# ----------------------------------------------------------------------------
def init_params(key, cfg):
    V, T, H, L = cfg["vocab"], cfg["type_vocab"], cfg["hidden"], cfg["max_len"]
    I, nlayers = cfg["intermediate"], cfg["layers"]
    keys = iter(jax.random.split(key, 8 + 6 * nlayers))

    def nrm(shape):
        return 0.02 * jax.random.normal(next(keys), shape, jnp.float32)

    word_emb = nrm((V, H))                         # f32 master (used for gather)

    Vp = V if V <= TN_CAP else _round_up(V, 512)   # lane-aligned vocab padding
    dec_w = jnp.zeros((H, Vp), jnp.bfloat16)
    dec_w = dec_w.at[:, :V].set(word_emb.T.astype(jnp.bfloat16))

    params = dict(
        word_emb=word_emb,
        pos_emb=nrm((L, H)),
        type_emb=nrm((T, H)),
        emb_ln_g=jnp.ones((H,), jnp.float32),
        emb_ln_b=jnp.zeros((H,), jnp.float32),
        layers=[],
        pool_w=nrm((H, H)),
        pool_b=jnp.zeros((H,), jnp.float32),
        pred_dense_w=nrm((H, H)).astype(jnp.bfloat16),
        pred_dense_b=jnp.zeros((H,), jnp.float32),
        pred_ln_g=jnp.ones((H,), jnp.float32),
        pred_ln_b=jnp.zeros((H,), jnp.float32),
        dec_w=dec_w,                                  # tied, transposed, padded
        dec_b=jnp.zeros((Vp,), jnp.float32),          # decoder bias (padded)
        sr_w=nrm((H, 2)),
        sr_b=jnp.zeros((2,), jnp.float32),
    )
    for _ in range(nlayers):
        params["layers"].append(dict(
            qkv_w=nrm((H, 3 * H)).astype(jnp.bfloat16),
            qkv_b=jnp.zeros((3 * H,), jnp.float32),
            ao_w=nrm((H, H)).astype(jnp.bfloat16),
            ao_b=jnp.zeros((H,), jnp.float32),
            ln1_g=jnp.ones((H,), jnp.float32), ln1_b=jnp.zeros((H,), jnp.float32),
            i_w=nrm((H, I)).astype(jnp.bfloat16),
            i_b=jnp.zeros((I,), jnp.float32),
            o_w=nrm((I, H)).astype(jnp.bfloat16),
            o_b=jnp.zeros((H,), jnp.float32),
            ln2_g=jnp.ones((H,), jnp.float32), ln2_b=jnp.zeros((H,), jnp.float32),
        ))
    return params


# ----------------------------------------------------------------------------
# BertForPreTraining forward (labels=None, attention_mask=None path)
# ----------------------------------------------------------------------------
def bert_for_pretraining(params, input_ids, token_type_ids, cfg):
    # TODO(synk): attention_mask and the labels (CrossEntropyLoss) path are
    #             not wired; this reproduces labels=None, attention_mask=None.
    B, S = input_ids.shape
    H, nh, V = cfg["hidden"], cfg["heads"], cfg["vocab"]

    # --- embeddings (gathers in JAX glue, LayerNorm in Pallas) ---
    positions = jnp.arange(S, dtype=jnp.int32)
    emb = (jnp.take(params["word_emb"], input_ids, axis=0)
           + params["pos_emb"][positions][None, :, :]
           + jnp.take(params["type_emb"], token_type_ids, axis=0))
    x = layernorm(emb.reshape(B * S, H), params["emb_ln_g"], params["emb_ln_b"])
    # dropout -> identity (inference semantics)

    # --- encoder ---
    for lp in params["layers"]:
        qkv = linear(x, lp["qkv_w"], lp["qkv_b"])              # fused QKV
        ctx = mha_attention(qkv.reshape(B, S, 3 * H), nh)      # (B, S, H)
        ctx = ctx.reshape(B * S, H)
        x = linear_residual_layernorm(ctx, lp["ao_w"], lp["ao_b"], x,
                                      lp["ln1_g"], lp["ln1_b"])
        inter = linear(x, lp["i_w"], lp["i_b"], activation="gelu")
        x = linear_residual_layernorm(inter, lp["o_w"], lp["o_b"], x,
                                      lp["ln2_g"], lp["ln2_b"])

    seq_out = x.reshape(B, S, H)

    # --- pooler + next-sentence head: tiny (B rows), keep in plain JAX ---
    cls_tok = seq_out[:, 0, :].astype(jnp.float32)
    pooled = jnp.tanh(cls_tok @ params["pool_w"] + params["pool_b"])
    seq_relationship_score = pooled @ params["sr_w"] + params["sr_b"]

    # --- MLM head: fused dense+gelu+LN, then tied decoder (plain matmul on the
    #     pre-transposed, lane-padded (H, Vp) bf16 embedding) ---
    t = linear_gelu_layernorm(x, params["pred_dense_w"], params["pred_dense_b"],
                              params["pred_ln_g"], params["pred_ln_b"])
    prediction_scores = linear(t, params["dec_w"], params["dec_b"],
                               out_dtype=jnp.float32)
    if prediction_scores.shape[1] != V:
        # TODO(synk): for best HBM efficiency consume the Vp-padded logits
        #             directly in the loss (masking padded columns) instead of
        #             paying this de-pad slice.
        prediction_scores = prediction_scores[:, :V]
    prediction_scores = prediction_scores.reshape(B, S, V)

    return prediction_scores, seq_relationship_score


# ----------------------------------------------------------------------------
if __name__ == "__main__":
    cfg = dict(vocab=128, type_vocab=2, hidden=32, max_len=16,
               layers=2, heads=4, intermediate=64)
    B, S = 2, 8

    key = jax.random.PRNGKey(0)
    k_param, k_ids = jax.random.split(key)
    params = init_params(k_param, cfg)

    input_ids = jax.random.randint(k_ids, (B, S), 0, cfg["vocab"],
                                   dtype=jnp.int32)
    token_type_ids = jnp.concatenate(
        [jnp.zeros((B, S // 2), jnp.int32), jnp.ones((B, S // 2), jnp.int32)],
        axis=1)

    pred_scores, seq_rel = bert_for_pretraining(params, input_ids,
                                                token_type_ids, cfg)
    jax.block_until_ready((pred_scores, seq_rel))

    assert pred_scores.shape == (B, S, cfg["vocab"])
    assert seq_rel.shape == (B, 2)
    print("KERNEL_OK")
</pallas_src>

<mosaic_0001>
module attributes {stable_mosaic.version = 11 : i64} {
  func.func @_layernorm_kernel(%arg0: i32, %arg1: memref<16x32xf32, #tpu.memory_space<vmem>>, %arg2: memref<1x32xf32, #tpu.memory_space<vmem>>, %arg3: memref<1x32xf32, #tpu.memory_space<vmem>>, %arg4: memref<16x32xbf16, #tpu.memory_space<vmem>>) attributes {dimension_semantics = [#tpu.dimension_semantics<parallel>], iteration_bounds = array<i64: 1>, scalar_prefetch = 0 : i64, scratch_operands = 0 : i64, tpu.core_type = #tpu.core_type<tc>, window_params = [{transform_indices = @transform_0, window_bounds = array<i64: 16, 32>}, {pipeline_mode = #tpu.pipeline_mode<synchronous>, transform_indices = @transform_1, window_bounds = array<i64: 1, 32>}, {pipeline_mode = #tpu.pipeline_mode<synchronous>, transform_indices = @transform_2, window_bounds = array<i64: 1, 32>}, {transform_indices = @transform_3, window_bounds = array<i64: 16, 32>}]} {
    %c0 = arith.constant 0 : index
    %c0_0 = arith.constant 0 : index
    %0 = vector.load %arg1[%c0, %c0_0] : memref<16x32xf32, #tpu.memory_space<vmem>>, vector<16x32xf32>
    %cst = arith.constant dense<0.000000e+00> : vector<16xf32>
    %1 = vector.multi_reduction <add>, %0, %cst [1] : vector<16x32xf32> to vector<16xf32>
    %2 = vector.shape_cast %1 : vector<16xf32> to vector<16x1xf32>
    %cst_1 = arith.constant 3.200000e+01 : f32
    %3 = vector.broadcast %cst_1 : f32 to vector<16x1xf32>
    %4 = arith.divf %2, %3 : vector<16x1xf32>
    %5 = vector.broadcast %4 : vector<16x1xf32> to vector<16x32xf32>
    %6 = arith.subf %0, %5 : vector<16x32xf32>
    %7 = arith.mulf %6, %6 : vector<16x32xf32>
    %cst_2 = arith.constant dense<0.000000e+00> : vector<16xf32>
    %8 = vector.multi_reduction <add>, %7, %cst_2 [1] : vector<16x32xf32> to vector<16xf32>
    %9 = vector.shape_cast %8 : vector<16xf32> to vector<16x1xf32>
    %cst_3 = arith.constant 3.200000e+01 : f32
    %10 = vector.broadcast %cst_3 : f32 to vector<16x1xf32>
    %11 = arith.divf %9, %10 : vector<16x1xf32>
    %12 = vector.broadcast %4 : vector<16x1xf32> to vector<16x32xf32>
    %13 = arith.subf %0, %12 : vector<16x32xf32>
    %cst_4 = arith.constant 9.99999996E-13 : f32
    %14 = vector.broadcast %cst_4 : f32 to vector<16x1xf32>
    %15 = arith.addf %11, %14 : vector<16x1xf32>
    %16 = math.rsqrt %15 : vector<16x1xf32>
    %17 = vector.broadcast %16 : vector<16x1xf32> to vector<16x32xf32>
    %18 = arith.mulf %13, %17 : vector<16x32xf32>
    %c0_5 = arith.constant 0 : index
    %c0_6 = arith.constant 0 : index
    %19 = vector.load %arg2[%c0_5, %c0_6] : memref<1x32xf32, #tpu.memory_space<vmem>>, vector<1x32xf32>
    %20 = vector.broadcast %19 : vector<1x32xf32> to vector<16x32xf32>
    %21 = arith.mulf %18, %20 : vector<16x32xf32>
    %c0_7 = arith.constant 0 : index
    %c0_8 = arith.constant 0 : index
    %22 = vector.load %arg3[%c0_7, %c0_8] : memref<1x32xf32, #tpu.memory_space<vmem>>, vector<1x32xf32>
    %23 = vector.broadcast %22 : vector<1x32xf32> to vector<16x32xf32>
    %24 = arith.addf %21, %23 : vector<16x32xf32>
    %25 = arith.truncf %24 : vector<16x32xf32> to vector<16x32xbf16>
    %c0_9 = arith.constant 0 : index
    %c0_10 = arith.constant 0 : index
    %26 = vector.load %arg4[%c0_9, %c0_10] : memref<16x32xbf16, #tpu.memory_space<vmem>>, vector<16x32xbf16>
    tpu.vector_store %arg4[%c0_9, %c0_10], %25 {strides = array<i32>} : memref<16x32xbf16, #tpu.memory_space<vmem>>, vector<16x32xbf16>,
    return
  }
  func.func @transform_0(%arg0: i32) -> (i32, i32) {
    %c0_i32 = arith.constant 0 : i32
    %c0_i32_0 = arith.constant 0 : i32
    return %arg0, %c0_i32 : i32, i32
  }
  func.func @transform_1(%arg0: i32) -> (i32, i32) {
    %c0_i32 = arith.constant 0 : i32
    %c0_i32_0 = arith.constant 0 : i32
    %c0_i32_1 = arith.constant 0 : i32
    return %c0_i32, %c0_i32_0 : i32, i32
  }
  func.func @transform_2(%arg0: i32) -> (i32, i32) {
    %c0_i32 = arith.constant 0 : i32
    %c0_i32_0 = arith.constant 0 : i32
    %c0_i32_1 = arith.constant 0 : i32
    return %c0_i32, %c0_i32_0 : i32, i32
  }
  func.func @transform_3(%arg0: i32) -> (i32, i32) {
    %c0_i32 = arith.constant 0 : i32
    %c0_i32_0 = arith.constant 0 : i32
    return %arg0, %c0_i32 : i32, i32
  }
}

</mosaic_0001>

<llo_original>
// kernel: tpu_custom_call.1
$region0: #{tpu_custom_call.1}
  #allocation0 [shape = 'u32[]', space=smem, size = 0x4, offset = 0x4, fixed_abs, tag = 'smem constant byte address 0x4 - core index']
  #allocation1 [shape = 'u32[144,128]{1,0:T(1,128)}', space=vmem, size = 0x12000, scoped, tag = 'internal scratch']
  %s0 = inlined_call_operand.hbm [shape: f32[16,32], index: 0, kind: input, shape index: {}]
  %s1 = inlined_call_operand.vmem [shape: f32[1,32], index: 1, kind: input, shape index: {}]
  %s2 = inlined_call_operand.vmem [shape: f32[1,32], index: 2, kind: input, shape index: {}]
  %s3 = inlined_call_operand.hbm [shape: bf16[16,32], index: 3, kind: output, shape index: {}]
  %s4 = sld [smem:[#allocation0]]
  $region26: #{tpu_custom_call.1} parent=0
    _
  %s6 = ssub.s32 1, %s4
  %s7 = scalar_select 0, %s6, %s4
  $region1: #{tpu_custom_call.1} parent=0
    #allocation2 [shape = 'u8[8192]{0}', space=vmem, size = 0x2000, scoped, tag = 'input window, operand 0, single buffered']
    #allocation3 [shape = 's32[1]{0}', space=sflag, size = 0x4, scoped, tag = 'scoped memory for tpu_custom_call.1']
    #allocation4 [shape = 's32[1]{0}', space=sflag, size = 0x4, scoped, tag = 'scoped memory for tpu_custom_call.1']
    #allocation5 [shape = 'u8[4096]{0}', space=vmem, size = 0x1000, scoped, tag = 'output window, operand 0, single buffered']
    %8 = vsyncpa [#allocation3], 0
    %9 = vsyncpa [#allocation4], 0
    // Predicated region
    $region2: #{tpu_custom_call.1} parent=1 // pred_check
      _
    $region3: #{tpu_custom_call.1} parent=1 // pred_check_branch
      %11 = sbr.rel (0) target = $region5
    $region4: #{tpu_custom_call.1} parent=1 // pred_region
      %s13 = ssub.s32 256, 256
      %14 = vsyncadd [#allocation3], %s13
      %s15 = sshll.u32 [#allocation2], 4
      %s16 = int_to_ptr.vmem [resolvable:$true] %s15
      %21 = dma.hbm_to_vmem [thread:$0]  %s0, 256, %s16, [#allocation3], 128, 128, 8
    $region5: #{tpu_custom_call.1} parent=1 // pred_fallthru
      _
    // Predicated region
    $region6: #{tpu_custom_call.1} parent=1 // pred_check
      _
    $region7: #{tpu_custom_call.1} parent=1 // pred_check_branch
      %23 = sbr.rel (0) target = $region9
    $region8: #{tpu_custom_call.1} parent=1 // pred_region
      _
    $region9: #{tpu_custom_call.1} parent=1 // pred_fallthru
      _
    // Predicated region
    $region10: #{tpu_custom_call.1} parent=1 // pred_check
      _
    $region11: #{tpu_custom_call.1} parent=1 // pred_check_branch
      %25 = sbr.rel (0) target = $region13
    $region12: #{tpu_custom_call.1} parent=1 // pred_region
      _
    $region13: #{tpu_custom_call.1} parent=1 // pred_fallthru
      _
    // Predicated region
    $region14: #{tpu_custom_call.1} parent=1 // pred_check
      _
    $region15: #{tpu_custom_call.1} parent=1 // pred_check_branch
      %27 = sbr.rel (0) target = $region17
    $region16: #{tpu_custom_call.1} parent=1 // pred_region
      %28 = dma.done [#allocation3], 256
    $region17: #{tpu_custom_call.1} parent=1 // pred_fallthru
      _
    %v29 = vld [vmem:[#allocation2] sm:$0xff]
    %v30 = vld [vmem:[#allocation2 + $0x8] sm:$0xff]
    %vm31 = vcmask 261120
    %v32 = vsel %vm31, %v29, 0.0
    %33 = vadd.xlane.f32.xlu0 %v32
    %v34 = vpop.xlane.xlu0 %33
    %v35 = vsel %vm31, %v30, 0.0
    %36 = vadd.xlane.f32.xlu0 %v35
    %v37 = vpop.xlane.xlu0 %36
    %v38 = vrcp.pop 32.0
    %v39 = vmul.f32 %v34, %v38
    %v40 = vmul.f32 %v37, %v38
    %v41 = vsub.f32 %v29, %v39
    %v42 = vsub.f32 %v30, %v40
    %v43 = vmul.f32 %v41, %v41
    %v44 = vmul.f32 %v42, %v42
    %v45 = vsel %vm31, %v43, 0.0
    %46 = vadd.xlane.f32.xlu0 %v45
    %v47 = vpop.xlane.xlu0 %46
    %v48 = vsel %vm31, %v44, 0.0
    %49 = vadd.xlane.f32.xlu0 %v48
    %v50 = vpop.xlane.xlu0 %49
    %v51 = vmul.f32 %v47, %v38
    %v52 = vmul.f32 %v50, %v38
    %v53 = vadd.f32 %v51, 1e-12
    %v54 = vadd.f32 %v52, 1e-12
    %v55 = vrsqrt.pop %v53
    %v56 = vrsqrt.pop %v54
    %v57 = vmul.f32 %v41, %v55
    %v58 = vmul.f32 %v42, %v56
    %v59 = vld [vmem:[%s1] sm:$0x1]
    %v61 = vlaneseq
    %v62 = vshrl.u32 %v61, 7
    %v63 = vsub.s32 0, %v62
    %v64 = vrot.slane %v59, %v63
    %v66 = vmul.f32 %v57, %v64
    %v67 = vmul.f32 %v58, %v64
    %v68 = vld [vmem:[%s2] sm:$0x1]
    %v70 = vlaneseq
    %v71 = vshrl.u32 %v70, 7
    %v72 = vsub.s32 0, %v71
    %v73 = vrot.slane %v68, %v72
    %v75 = vadd.f32 %v66, %v73
    %v76 = vadd.f32 %v67, %v73
    %v77 = vpack.c.bf16 %v76, %v75
    %v79 = vunpack.c.l.b16 %v77
    %v80 = vunpack.c.h.b16 %v77
    %v81 = vpack.c.b16 %v79, %v79
    %v82 = vpack.c.b16 %v80, %v80
    %vm85 = vcmask 257024
    %86 = vst.msk [vmem:[#allocation5] sm:$0xf] %vm85, %v81
    %87 = vst.msk [vmem:[#allocation5 + $0x4] sm:$0xf] %vm85, %v82
    // Predicated region
    $region18: #{tpu_custom_call.1} parent=1 // pred_check
      _
    $region19: #{tpu_custom_call.1} parent=1 // pred_check_branch
      %89 = sbr.rel (0) target = $region21
    $region20: #{tpu_custom_call.1} parent=1 // pred_region
      %s91 = ssub.s32 128, 128
      %92 = vsyncadd [#allocation4], %s91
      %s93 = sshll.u32 [#allocation5], 4
      %s94 = int_to_ptr.vmem [resolvable:$true] %s93
      %99 = dma.vmem_to_hbm [thread:$0]  %s94, 128, %s3, [#allocation4], 64, 64, 4
    $region21: #{tpu_custom_call.1} parent=1 // pred_fallthru
      _
    // Predicated region
    $region22: #{tpu_custom_call.1} parent=1 // pred_check
      _
    $region23: #{tpu_custom_call.1} parent=1 // pred_check_branch
      %101 = sbr.rel (0) target = $region25
    $region24: #{tpu_custom_call.1} parent=1 // pred_region
      %102 = dma.done [#allocation4], 128
    $region25: #{tpu_custom_call.1} parent=1 // pred_fallthru
      _
    %103 = vsyncpa [#allocation3], 1
    %104 = vsyncpa [#allocation4], 1

</llo_original>
